<compile_context>
chip_gen: v6e
topology: v6e:2x2x1
jax: 0.10.0
libtpu: 0.0.40
codegen_flags: <defaults>
</compile_context>

<pallas_src>
from functools import partial

import jax
import jax.numpy as jnp
from jax.experimental import pallas as pl
from jax.experimental.pallas import tpu as pltpu


def _self_attention_kernel(x_ref, wq_ref, bq_ref, wk_ref, bk_ref, wv_ref,
                           bv_ref, gamma_ref, o_ref, f_ref, h_ref, *,
                           matmul_dtype, softmax_dtype):
    """One (batch b, column-tile j) grid step.

    x_ref    : (1, C, N)    per-batch activations, resident across the j axis
    wq/wk    : (Cq, C)      query / key 1x1-conv weights
    wv_ref   : (Chp, C)     value weights augmented with zero rows (wrapper)
    bv_ref   : (Chp, 1)     value bias augmented with a 1 (ones row) + zeros
    gamma_ref: (1,) scalar in SMEM
    o_ref    : (1, C, Tj)   output column tile
    f_ref    : (Cq, N)      VMEM scratch: query projection, carried over j
    h_ref    : (Chp, N)     VMEM scratch: [value projection ; ones ; 0 pad]
    """
    C = o_ref.shape[1]
    Tj = o_ref.shape[2]

    j = pl.program_id(1)

    # --- projections hoisted out of the column loop --------------------------
    # Computed once per batch (j == 0), stored in matmul_dtype, and reused for
    # every column tile (the j grid axis is "arbitrary", so scratch persists).
    @pl.when(j == 0)
    def _():
        x = x_ref[0]                                                    # (C, N)
        f = jnp.dot(wq_ref[...], x,
                    preferred_element_type=jnp.float32) + bq_ref[...]  # (Cq, N)
        # wv/bv are pre-augmented in the wrapper: rows [0:C] give Wv@x+bv,
        # row C gives all-ones (0 @ x + 1), remaining rows are zero padding.
        # The ones row makes the att matmul below also emit the softmax
        # denominator from the same MXU call.
        h = jnp.dot(wv_ref[...], x,
                    preferred_element_type=jnp.float32) + bv_ref[...]  # (Chp, N)
        f_ref[...] = f.astype(matmul_dtype)
        h_ref[...] = h.astype(matmul_dtype)

    # --- per-column-tile attention -------------------------------------------
    # Column tile sliced from the resident x block (no second DMA'd copy of x).
    col0 = pl.multiple_of(j * Tj, Tj)
    x_j = x_ref[0, :, pl.ds(col0, Tj)]                                  # (C, Tj)

    g = jnp.dot(wk_ref[...], x_j,
                preferred_element_type=jnp.float32) + bk_ref[...]      # (Cq, Tj)

    # s[i, t] = sum_c f[c, i] * g[c, t]  -- contract axis 0 of both operands
    # directly on the MXU (no transpose of f, no (N, Cq) temporary).
    s = jax.lax.dot_general(
        f_ref[...], g.astype(matmul_dtype),
        dimension_numbers=(((0,), (0,)), ((), ())),
        preferred_element_type=jnp.float32)                             # (N, Tj)

    # Softmax over the key axis i (torch dim=1 of the (B, N, N) scores).  The
    # key axis is whole per tile, so no online softmax is needed.
    # softmax_dtype=bf16 is the v6e/v7x fast path (bf16 VPU/EUP); f32 default
    # is the right choice on v5e.
    s_t = s.astype(softmax_dtype)
    m = jnp.max(s_t, axis=0, keepdims=True)                             # (1, Tj)
    e = jnp.exp(s_t - m)                                                # (N, Tj) EUP

    # One MXU call produces both the unnormalized attention output (rows 0:C)
    # and the softmax denominator (row C, thanks to the ones row in h_ref).
    att_aug = jnp.dot(h_ref[...], e.astype(matmul_dtype),
                      preferred_element_type=jnp.float32)               # (Chp, Tj)
    att = att_aug[:C, :]                                                # (C, Tj)
    denom = att_aug[C:C + 1, :]                                         # (1, Tj)
    inv = pl.reciprocal(denom, approx=True)                             # EUP

    o_ref[0] = (gamma_ref[0] * (att * inv) + x_j).astype(o_ref.dtype)


def _pick_col_tile(n, max_tile):
    """Largest 128-multiple divisor of n that is <= max_tile (else n itself)."""
    if n % 128 != 0:
        # TODO(synk): non-128-aligned H*W falls back to a single full-width
        # tile (materializes the whole (N, N) score block in VMEM); padding +
        # key masking would be needed for a graceful path.
        return n
    t = min(max_tile, n)
    t -= t % 128
    while t > 128 and n % t != 0:
        t -= 128
    return t if (t >= 128 and n % t == 0) else n


def self_attention_pallas(x, wq, bq, wk, bk, wv, bv, gamma, *,
                          matmul_dtype=jnp.bfloat16,
                          softmax_dtype=jnp.float32,
                          max_col_tile=256,
                          vmem_limit_bytes=None):
    """x: (B, C, H, W) float32. Conv weights already spectral-normalized.

    max_col_tile caps the live VMEM footprint (~N * Tj score/exp tiles);
    256 targets the 256-wide MXU of v6e/v7x, drop to 128 for very large N or
    for v5e.  softmax_dtype=jnp.bfloat16 enables the bf16 softmax tail
    (v6e/v7x); keep f32 on v5e.
    """
    B, C, H, W = x.shape
    N = H * W
    Cq = wq.shape[0]
    Chp = ((C + 1 + 7) // 8) * 8          # value rows + ones row, sublane-padded
    Tj = _pick_col_tile(N, max_col_tile)
    n_col = N // Tj

    x_flat = x.reshape(B, C, N)
    bq2 = bq.reshape(Cq, 1)
    bk2 = bk.reshape(Cq, 1)
    gamma1 = gamma.reshape(1)

    # Augment the value projection so the kernel's att matmul also produces
    # the softmax denominator: row C of Wv_aug is zero with bias 1 -> the
    # projected row is all-ones; remaining pad rows are zero.
    wv_aug = jnp.concatenate(
        [wv, jnp.zeros((Chp - C, C), wv.dtype)], axis=0)                # (Chp, C)
    bv_aug = jnp.concatenate(
        [bv.reshape(C, 1),
         jnp.ones((1, 1), bv.dtype),
         jnp.zeros((Chp - C - 1, 1), bv.dtype)], axis=0)                # (Chp, 1)

    mm_bytes = jnp.dtype(matmul_dtype).itemsize
    sm_bytes = jnp.dtype(softmax_dtype).itemsize
    if vmem_limit_bytes is None:
        live = (2 * C * N * 4                             # resident x (double-buffered)
                + (Cq + Chp) * N * mm_bytes               # f / h scratch (carried)
                + 2 * C * Tj * 4                          # double-buffered output tile
                + N * Tj * (4 + sm_bytes + mm_bytes)      # s, e, e-cast temporaries
                + 2 * (2 * Cq * C + Chp * C + 2 * Cq + Chp) * 4)  # weights / biases
        vmem_limit_bytes = min(max(2 * live, 32 * 1024 * 1024), 48 * 1024 * 1024)

    cost = pl.CostEstimate(
        flops=(2 * B * N * C * (Cq + Chp)     # f, h projections (once per batch)
               + 2 * B * N * Cq * C           # g projections (tiled, cover N)
               + 2 * B * Cq * N * N           # scores
               + 2 * B * Chp * N * N),        # att + denominator (ones row)
        transcendentals=B * N * N + B * N,
        bytes_accessed=4 * (2 * B * C * N + 2 * Cq * C + Chp * C
                            + 2 * Cq + Chp + 1),
    )

    kernel = partial(_self_attention_kernel,
                     matmul_dtype=matmul_dtype, softmax_dtype=softmax_dtype)

    out_flat = pl.pallas_call(
        kernel,
        out_shape=jax.ShapeDtypeStruct((B, C, N), x.dtype),
        grid_spec=pltpu.PrefetchScalarGridSpec(
            num_scalar_prefetch=0,
            grid=(B, n_col),                                       # j innermost
            in_specs=[
                pl.BlockSpec((1, C, N), lambda b, j: (b, 0, 0)),   # x (resident over j)
                pl.BlockSpec((Cq, C), lambda b, j: (0, 0)),        # Wq
                pl.BlockSpec((Cq, 1), lambda b, j: (0, 0)),        # bq
                pl.BlockSpec((Cq, C), lambda b, j: (0, 0)),        # Wk
                pl.BlockSpec((Cq, 1), lambda b, j: (0, 0)),        # bk
                pl.BlockSpec((Chp, C), lambda b, j: (0, 0)),       # Wv (augmented)
                pl.BlockSpec((Chp, 1), lambda b, j: (0, 0)),       # bv (augmented)
                pl.BlockSpec(memory_space=pltpu.MemorySpace.SMEM), # gamma (scalar path)
            ],
            out_specs=pl.BlockSpec((1, C, Tj), lambda b, j: (b, 0, j)),
            scratch_shapes=[
                pltpu.VMEM((Cq, N), matmul_dtype),    # f, carried across j
                pltpu.VMEM((Chp, N), matmul_dtype),   # [h ; ones ; 0], carried across j
            ],
        ),
        compiler_params=pltpu.CompilerParams(
            dimension_semantics=("parallel", "arbitrary"),
            vmem_limit_bytes=vmem_limit_bytes),
        cost_estimate=cost,
    )(x_flat, wq, bq2, wk, bk2, wv_aug, bv_aug, gamma1)

    return out_flat.reshape(B, C, H, W)


def _spectral_norm(w):
    """Exact spectral normalization: W / sigma_max(W) (parameter-setup glue)."""
    sigma = jnp.linalg.svd(w, compute_uv=False)[0]
    return w / sigma


def _reference(x, wq, bq, wk, bk, wv, bv, gamma):
    """Pure-JAX reference mirroring the PyTorch forward."""
    B, C, H, W = x.shape
    N = H * W
    xf = x.reshape(B, C, N)
    f = jnp.einsum('oc,bcn->bon', wq, xf) + bq[None, :, None]
    g = jnp.einsum('oc,bcn->bon', wk, xf) + bk[None, :, None]
    h = jnp.einsum('oc,bcn->bon', wv, xf) + bv[None, :, None]
    s = jnp.einsum('bci,bcj->bij', f, g)
    beta = jax.nn.softmax(s, axis=1)
    o = gamma.reshape(()) * jnp.einsum('bci,bij->bcj', h, beta) + xf
    return o.reshape(B, C, H, W)


if __name__ == "__main__":
    key = jax.random.PRNGKey(0)
    B, C, H, W = 2, 16, 16, 16        # N = 256
    Cq = C // 8                       # = 2

    k_x, k_wq, k_bq, k_wk, k_bk, k_wv, k_bv = jax.random.split(key, 7)

    x = jax.random.normal(k_x, (B, C, H, W), dtype=jnp.float32)

    # Conv1d(C, Cq, 1) weights: (out, in) after squeezing the length-1 kernel dim.
    wq = _spectral_norm(jax.random.normal(k_wq, (Cq, C), jnp.float32) * 0.1)
    wk = _spectral_norm(jax.random.normal(k_wk, (Cq, C), jnp.float32) * 0.1)
    wv = _spectral_norm(jax.random.normal(k_wv, (C, C), jnp.float32) * 0.1)
    bq = jax.random.normal(k_bq, (Cq,), jnp.float32) * 0.1
    bk = jax.random.normal(k_bk, (Cq,), jnp.float32) * 0.1
    bv = jax.random.normal(k_bv, (C,), jnp.float32) * 0.1

    gamma0 = jnp.array([0.0], dtype=jnp.float32)    # module's __init__ value
    gamma_nz = jnp.array([0.7], dtype=jnp.float32)  # exercises the attention path

    # (1) gamma = 0: output equals x exactly (residual, tiling, scratch carry).
    out0 = jax.block_until_ready(
        self_attention_pallas(x, wq, bq, wk, bk, wv, bv, gamma0, max_col_tile=128))
    assert out0.shape == (B, C, H, W)
    assert jnp.allclose(out0, x, atol=1e-6), "mismatch (gamma=0 residual path)"

    ref = _reference(x, wq, bq, wk, bk, wv, bv, gamma_nz)

    # (2) all-f32 path, two 128-wide column tiles: tight check of the tiled
    #     math, the f/h scratch carry, and the MXU-denominator trick.
    out_f32 = jax.block_until_ready(
        self_attention_pallas(x, wq, bq, wk, bk, wv, bv, gamma_nz,
                              matmul_dtype=jnp.float32, softmax_dtype=jnp.float32,
                              max_col_tile=128))
    assert jnp.allclose(out_f32, ref, atol=1e-2, rtol=1e-2), "mismatch (f32 path)"

    # (3) default perf path: bf16 MXU feeds, f32 softmax tail (v5e-safe), Tj=256.
    out_bf16 = jax.block_until_ready(
        self_attention_pallas(x, wq, bq, wk, bk, wv, bv, gamma_nz))
    assert jnp.allclose(out_bf16, ref, atol=5e-2, rtol=5e-2), "mismatch (bf16 path)"

    # (4) v6e/v7x fast path: bf16 softmax tail as well.
    out_bf16sm = jax.block_until_ready(
        self_attention_pallas(x, wq, bq, wk, bk, wv, bv, gamma_nz,
                              softmax_dtype=jnp.bfloat16, max_col_tile=128))
    assert jnp.allclose(out_bf16sm, ref, atol=5e-2, rtol=5e-2), \
        "mismatch (bf16 softmax path)"

    print("KERNEL_OK")
</pallas_src>

<mosaic_0001>
module attributes {stable_mosaic.version = 11 : i64} {
  func.func @_self_attention_kernel(%arg0: i32, %arg1: i32, %arg2: memref<1x16x256xf32, #tpu.memory_space<vmem>>, %arg3: memref<2x16xf32, #tpu.memory_space<vmem>>, %arg4: memref<2x1xf32, #tpu.memory_space<vmem>>, %arg5: memref<2x16xf32, #tpu.memory_space<vmem>>, %arg6: memref<2x1xf32, #tpu.memory_space<vmem>>, %arg7: memref<24x16xf32, #tpu.memory_space<vmem>>, %arg8: memref<24x1xf32, #tpu.memory_space<vmem>>, %arg9: memref<1xf32, #tpu.memory_space<smem>>, %arg10: memref<1x16x128xf32, #tpu.memory_space<vmem>>, %arg11: memref<2x256xbf16, #tpu.memory_space<vmem>>, %arg12: memref<24x256xbf16, #tpu.memory_space<vmem>>) attributes {dimension_semantics = [#tpu.dimension_semantics<parallel>, #tpu.dimension_semantics<arbitrary>], iteration_bounds = array<i64: 2, 2>, scalar_prefetch = 0 : i64, scratch_operands = 2 : i64, tpu.core_type = #tpu.core_type<tc>, window_params = [{transform_indices = @transform_0, window_bounds = array<i64: 1, 16, 256>}, {pipeline_mode = #tpu.pipeline_mode<synchronous>, transform_indices = @transform_1, window_bounds = array<i64: 2, 16>}, {pipeline_mode = #tpu.pipeline_mode<synchronous>, transform_indices = @transform_2, window_bounds = array<i64: 2, 1>}, {pipeline_mode = #tpu.pipeline_mode<synchronous>, transform_indices = @transform_3, window_bounds = array<i64: 2, 16>}, {pipeline_mode = #tpu.pipeline_mode<synchronous>, transform_indices = @transform_4, window_bounds = array<i64: 2, 1>}, {pipeline_mode = #tpu.pipeline_mode<synchronous>, transform_indices = @transform_5, window_bounds = array<i64: 24, 16>}, {pipeline_mode = #tpu.pipeline_mode<synchronous>, transform_indices = @transform_6, window_bounds = array<i64: 24, 1>}, {transform_indices = @transform_7, window_bounds = array<i64: 1>}, {transform_indices = @transform_8, window_bounds = array<i64: 1, 16, 128>}]} {
    %c0_i32 = arith.constant 0 : i32
    %0 = arith.cmpi eq, %arg1, %c0_i32 : i32
    %1 = arith.extui %0 : i1 to i32
    %c0_i32_0 = arith.constant 0 : i32
    %2 = arith.cmpi ne, %1, %c0_i32_0 : i32
    scf.if %2 {
      %c0_17 = arith.constant 0 : index
      %c0_18 = arith.constant 0 : index
      %c0_19 = arith.constant 0 : index
      %36 = vector.load %arg2[%c0_17, %c0_18, %c0_19] : memref<1x16x256xf32, #tpu.memory_space<vmem>>, vector<1x16x256xf32>
      %37 = vector.shape_cast %36 : vector<1x16x256xf32> to vector<16x256xf32>
      %c0_20 = arith.constant 0 : index
      %c0_21 = arith.constant 0 : index
      %38 = vector.load %arg3[%c0_20, %c0_21] : memref<2x16xf32, #tpu.memory_space<vmem>>, vector<2x16xf32>
      %cst_22 = arith.constant dense<0.000000e+00> : vector<2x256xf32>
      %39 = tpu.matmul %38, %37, %cst_22 {dimension_numbers = #tpu.dot_dimension_numbers<[1], [0], [0], [1], [0, 0, 1, 1], [], []>} : vector<2x16xf32>, vector<16x256xf32>, vector<2x256xf32> -> vector<2x256xf32>
      %c0_23 = arith.constant 0 : index
      %c0_24 = arith.constant 0 : index
      %40 = vector.load %arg4[%c0_23, %c0_24] : memref<2x1xf32, #tpu.memory_space<vmem>>, vector<2x1xf32>
      %41 = vector.broadcast %40 : vector<2x1xf32> to vector<2x256xf32>
      %42 = arith.addf %39, %41 : vector<2x256xf32>
      %c0_25 = arith.constant 0 : index
      %c0_26 = arith.constant 0 : index
      %43 = vector.load %arg7[%c0_25, %c0_26] : memref<24x16xf32, #tpu.memory_space<vmem>>, vector<24x16xf32>
      %cst_27 = arith.constant dense<0.000000e+00> : vector<24x256xf32>
      %44 = tpu.matmul %43, %37, %cst_27 {dimension_numbers = #tpu.dot_dimension_numbers<[1], [0], [0], [1], [0, 0, 1, 1], [], []>} : vector<24x16xf32>, vector<16x256xf32>, vector<24x256xf32> -> vector<24x256xf32>
      %c0_28 = arith.constant 0 : index
      %c0_29 = arith.constant 0 : index
      %45 = vector.load %arg8[%c0_28, %c0_29] : memref<24x1xf32, #tpu.memory_space<vmem>>, vector<24x1xf32>
      %46 = vector.broadcast %45 : vector<24x1xf32> to vector<24x256xf32>
      %47 = arith.addf %44, %46 : vector<24x256xf32>
      %48 = arith.truncf %42 : vector<2x256xf32> to vector<2x256xbf16>
      %c0_30 = arith.constant 0 : index
      %c0_31 = arith.constant 0 : index
      %49 = vector.load %arg11[%c0_30, %c0_31] : memref<2x256xbf16, #tpu.memory_space<vmem>>, vector<2x256xbf16>
      tpu.vector_store %arg11[%c0_30, %c0_31], %48 {strides = array<i32>} : memref<2x256xbf16, #tpu.memory_space<vmem>>, vector<2x256xbf16>,
      %50 = arith.truncf %47 : vector<24x256xf32> to vector<24x256xbf16>
      %c0_32 = arith.constant 0 : index
      %c0_33 = arith.constant 0 : index
      %51 = vector.load %arg12[%c0_32, %c0_33] : memref<24x256xbf16, #tpu.memory_space<vmem>>, vector<24x256xbf16>
      tpu.vector_store %arg12[%c0_32, %c0_33], %50 {strides = array<i32>} : memref<24x256xbf16, #tpu.memory_space<vmem>>, vector<24x256xbf16>,
    } else {
    }
    %c128_i32 = arith.constant 128 : i32
    %3 = arith.muli %arg1, %c128_i32 : i32
    %4 = tpu.assume_multiple %3, 128 : i32
    %c0 = arith.constant 0 : index
    %c0_1 = arith.constant 0 : index
    %5 = arith.index_cast %4 : i32 to index
    %6 = vector.load %arg2[%c0, %c0_1, %5] : memref<1x16x256xf32, #tpu.memory_space<vmem>>, vector<1x16x128xf32>
    %7 = vector.shape_cast %6 : vector<1x16x128xf32> to vector<16x128xf32>
    %c0_2 = arith.constant 0 : index
    %c0_3 = arith.constant 0 : index
    %8 = vector.load %arg5[%c0_2, %c0_3] : memref<2x16xf32, #tpu.memory_space<vmem>>, vector<2x16xf32>
    %cst = arith.constant dense<0.000000e+00> : vector<2x128xf32>
    %9 = tpu.matmul %8, %7, %cst {dimension_numbers = #tpu.dot_dimension_numbers<[1], [0], [0], [1], [0, 0, 1, 1], [], []>} : vector<2x16xf32>, vector<16x128xf32>, vector<2x128xf32> -> vector<2x128xf32>
    %c0_4 = arith.constant 0 : index
    %c0_5 = arith.constant 0 : index
    %10 = vector.load %arg6[%c0_4, %c0_5] : memref<2x1xf32, #tpu.memory_space<vmem>>, vector<2x1xf32>
    %11 = vector.broadcast %10 : vector<2x1xf32> to vector<2x128xf32>
    %12 = arith.addf %9, %11 : vector<2x128xf32>
    %c0_6 = arith.constant 0 : index
    %c0_7 = arith.constant 0 : index
    %13 = vector.load %arg11[%c0_6, %c0_7] : memref<2x256xbf16, #tpu.memory_space<vmem>>, vector<2x256xbf16>
    %14 = arith.truncf %12 : vector<2x128xf32> to vector<2x128xbf16>
    %cst_8 = arith.constant dense<0.000000e+00> : vector<256x128xf32>
    %15 = tpu.matmul %13, %14, %cst_8 {dimension_numbers = #tpu.dot_dimension_numbers<[0], [0], [1], [1], [0, 1, 1, 1], [], []>} : vector<2x256xbf16>, vector<2x128xbf16>, vector<256x128xf32> -> vector<256x128xf32>
    %cst_9 = arith.constant dense<0xFF800000> : vector<128xf32>
    %16 = vector.multi_reduction <maximumf>, %15, %cst_9 [0] : vector<256x128xf32> to vector<128xf32>
    %17 = vector.shape_cast %16 : vector<128xf32> to vector<1x128xf32>
    %18 = vector.broadcast %17 : vector<1x128xf32> to vector<256x128xf32>
    %19 = arith.subf %15, %18 : vector<256x128xf32>
    %20 = math.exp %19 : vector<256x128xf32>
    %c0_10 = arith.constant 0 : index
    %c0_11 = arith.constant 0 : index
    %21 = vector.load %arg12[%c0_10, %c0_11] : memref<24x256xbf16, #tpu.memory_space<vmem>>, vector<24x256xbf16>
    %22 = arith.truncf %20 : vector<256x128xf32> to vector<256x128xbf16>
    %cst_12 = arith.constant dense<0.000000e+00> : vector<24x128xf32>
    %23 = tpu.matmul %21, %22, %cst_12 {dimension_numbers = #tpu.dot_dimension_numbers<[1], [0], [0], [1], [0, 0, 1, 1], [], []>} : vector<24x256xbf16>, vector<256x128xbf16>, vector<24x128xf32> -> vector<24x128xf32>
    %24 = vector.extract_strided_slice %23 {offsets = [0, 0], sizes = [16, 128], strides = [1, 1]} : vector<24x128xf32> to vector<16x128xf32>
    %25 = vector.extract_strided_slice %23 {offsets = [16, 0], sizes = [1, 128], strides = [1, 1]} : vector<24x128xf32> to vector<1x128xf32>
    %26 = tpu.reciprocal %25 {approx = true} : vector<1x128xf32> -> vector<1x128xf32>
    %c0_13 = arith.constant 0 : index
    %27 = memref.load %arg9[%c0_13] : memref<1xf32, #tpu.memory_space<smem>>
    %28 = vector.broadcast %26 : vector<1x128xf32> to vector<16x128xf32>
    %29 = arith.mulf %24, %28 : vector<16x128xf32>
    %30 = vector.broadcast %27 : f32 to vector<16x128xf32>
    %31 = arith.mulf %30, %29 : vector<16x128xf32>
    %32 = arith.addf %31, %7 : vector<16x128xf32>
    %c0_14 = arith.constant 0 : index
    %c0_15 = arith.constant 0 : index
    %c0_16 = arith.constant 0 : index
    %33 = vector.load %arg10[%c0_14, %c0_15, %c0_16] : memref<1x16x128xf32, #tpu.memory_space<vmem>>, vector<1x16x128xf32>
    %34 = vector.shape_cast %33 : vector<1x16x128xf32> to vector<16x128xf32>
    %35 = vector.shape_cast %32 : vector<16x128xf32> to vector<1x16x128xf32>
    tpu.vector_store %arg10[%c0_14, %c0_15, %c0_16], %35 {strides = array<i32>} : memref<1x16x128xf32, #tpu.memory_space<vmem>>, vector<1x16x128xf32>,
    return
  }
  func.func @transform_0(%arg0: i32, %arg1: i32) -> (i32, i32, i32) {
    %c0_i32 = arith.constant 0 : i32
    %c0_i32_0 = arith.constant 0 : i32
    %c0_i32_1 = arith.constant 0 : i32
    return %arg0, %c0_i32, %c0_i32_0 : i32, i32, i32
  }
  func.func @transform_1(%arg0: i32, %arg1: i32) -> (i32, i32) {
    %c0_i32 = arith.constant 0 : i32
    %c0_i32_0 = arith.constant 0 : i32
    %c0_i32_1 = arith.constant 0 : i32
    return %c0_i32, %c0_i32_0 : i32, i32
  }
  func.func @transform_2(%arg0: i32, %arg1: i32) -> (i32, i32) {
    %c0_i32 = arith.constant 0 : i32
    %c0_i32_0 = arith.constant 0 : i32
    %c0_i32_1 = arith.constant 0 : i32
    return %c0_i32, %c0_i32_0 : i32, i32
  }
  func.func @transform_3(%arg0: i32, %arg1: i32) -> (i32, i32) {
    %c0_i32 = arith.constant 0 : i32
    %c0_i32_0 = arith.constant 0 : i32
    %c0_i32_1 = arith.constant 0 : i32
    return %c0_i32, %c0_i32_0 : i32, i32
  }
  func.func @transform_4(%arg0: i32, %arg1: i32) -> (i32, i32) {
    %c0_i32 = arith.constant 0 : i32
    %c0_i32_0 = arith.constant 0 : i32
    %c0_i32_1 = arith.constant 0 : i32
    return %c0_i32, %c0_i32_0 : i32, i32
  }
  func.func @transform_5(%arg0: i32, %arg1: i32) -> (i32, i32) {
    %c0_i32 = arith.constant 0 : i32
    %c0_i32_0 = arith.constant 0 : i32
    %c0_i32_1 = arith.constant 0 : i32
    return %c0_i32, %c0_i32_0 : i32, i32
  }
  func.func @transform_6(%arg0: i32, %arg1: i32) -> (i32, i32) {
    %c0_i32 = arith.constant 0 : i32
    %c0_i32_0 = arith.constant 0 : i32
    %c0_i32_1 = arith.constant 0 : i32
    return %c0_i32, %c0_i32_0 : i32, i32
  }
  func.func @transform_7(%arg0: i32, %arg1: i32) -> i32 {
    %c0_i32 = arith.constant 0 : i32
    %c0_i32_0 = arith.constant 0 : i32
    return %c0_i32 : i32
  }
  func.func @transform_8(%arg0: i32, %arg1: i32) -> (i32, i32, i32) {
    %c0_i32 = arith.constant 0 : i32
    %c0_i32_0 = arith.constant 0 : i32
    return %arg0, %c0_i32, %arg1 : i32, i32, i32
  }
}

</mosaic_0001>

<llo_original>
// kernel: tpu_custom_call.1
$region0: #{tpu_custom_call.1}
  #allocation0 [shape = 'u32[]', space=smem, size = 0x4, offset = 0x4, fixed_abs, tag = 'smem constant byte address 0x4 - core index']
  #allocation1 [shape = 'u32[144,128]{1,0:T(1,128)}', space=vmem, size = 0x12000, scoped, tag = 'internal scratch']
  #allocation2 [shape = 'bf16[2,256]{1,0:T(2,128)(2,1)}', space=vmem, size = 0x400, scoped, tag = 'scratch operand']
  #allocation3 [shape = 'bf16[24,256]{1,0:T(8,128)(2,1)}', space=vmem, size = 0x3000, scoped, tag = 'scratch operand']
  #allocation4 [shape = 'f32[1]{0:T(128)S(6)}', space=smem, size = 0x200, scoped, tag = 'scoped memory for tpu_custom_call.1']
  %s0 = inlined_call_operand.vmem [shape: f32[2,16,256], index: 0, kind: input, shape index: {}]
  %s1 = inlined_call_operand.hbm [shape: f32[2,16], index: 1, kind: input, shape index: {}]
  %s2 = inlined_call_operand.vmem [shape: f32[2,1], index: 2, kind: input, shape index: {}]
  %s3 = inlined_call_operand.hbm [shape: f32[2,16], index: 3, kind: input, shape index: {}]
  %s4 = inlined_call_operand.vmem [shape: f32[2,1], index: 4, kind: input, shape index: {}]
  %s5 = inlined_call_operand.vmem [shape: f32[24,16], index: 5, kind: input, shape index: {}]
  %s6 = inlined_call_operand.vmem [shape: f32[24,1], index: 6, kind: input, shape index: {}]
  %s7 = inlined_call_operand.<no memory space> [shape: f32[1], index: 7, kind: input, shape index: {}]
  %s8 = inlined_call_operand.hbm [shape: f32[2,16,256], index: 8, kind: output, shape index: {}]
  %s9 = sld [smem:[#allocation0]]
  $region77: #{tpu_custom_call.1} parent=0
    _
  %s11 = ssub.s32 1, %s9
  %s12 = scalar_select 0, %s11, %s9
  %13 = sst [smem:[#allocation4]] %s7
  $region1: #{tpu_custom_call.1} parent=0
    #allocation5 [shape = 'u8[1024]{0}', space=vmem, size = 0x400, scoped, tag = 'input window, operand 1, single buffered']
    #allocation6 [shape = 's32[2]{0}', space=sflag, size = 0x8, scoped, tag = 'scoped memory for tpu_custom_call.1']
    #allocation7 [shape = 's32[2]{0}', space=sflag, size = 0x8, scoped, tag = 'scoped memory for tpu_custom_call.1']
    #allocation8 [shape = 'u8[1024]{0}', space=vmem, size = 0x400, scoped, tag = 'input window, operand 3, single buffered']
    #allocation9 [shape = 's32[1]{0}', space=sflag, size = 0x4, scoped, tag = 'scoped memory for tpu_custom_call.1']
    #allocation10 [shape = 'u8[16384]{0}', space=vmem, size = 0x4000, scoped, tag = 'output window, operand 0']
    %14 = vsyncpa [#allocation6], 0
    %15 = vsyncpa [#allocation9], 0
    %16 = vsyncpa [#allocation7], 0
    %s17 = scalar_lea.sflag [#allocation7], 1
    %18 = vsyncpa %s17, 0
    loop: start=0, step=1, limit=6
    $region2: #{tpu_custom_call.1} parent=1 // loop_pre_header
      _
    $region3: #{tpu_custom_call.1} parent=1 // loop_header
      %s20 = sphi 0, %s24
      %p21 = scmp.ge.s32.totalorder %s20, 6
      %s27 = sphi 0, %s39
      %s28 = sphi 0, %s35
      %s29 = sphi 0, %s27
      %s30 = sphi 0, %s28
      %s31 = sphi 0, %s29
      %s32 = sphi 0, %s30
      %s42 = sphi 0, %s44
      %s45 = sphi 0, %s42
      %s46 = sphi 0, %s45
      %s62 = sphi 0, %s46
      %s66 = sphi 0, %s66
      %s68 = sphi 0, %s66
      %s69 = sphi 0, %s68
      %s83 = sphi 0, %s69
      %s87 = sphi 0, %s87
      %s89 = sphi 0, %s87
      %s90 = sphi 0, %s89
      %s104 = sphi 0, %s90
      %s108 = sphi 0, %s108
      %s110 = sphi 0, %s108
      %s111 = sphi 0, %s110
      %s125 = sphi 0, %s111
      %s129 = sphi 0, %s129
      %s131 = sphi 0, %s129
      %s132 = sphi 0, %s131
      %s146 = sphi 0, %s132
      %s150 = sphi 0, %s150
      %s152 = sphi 0, %s150
      %s153 = sphi 0, %s152
      %s167 = sphi 0, %s153
      %s171 = sphi 0, %s171
      %s173 = sphi 0, %s171
      %s174 = sphi 0, %s173
      %s188 = sphi 0, %s174
      %s192 = sphi 0, %s192
      %s194 = sphi 0, %s192
      %s195 = sphi 0, %s194
      %s209 = sphi 0, %s195
      %s217 = sphi 0, %s219
      %s220 = sphi 0, %s217
      %s221 = sphi 0, %s220
      %s237 = sphi 0, %s221
    $region4: #{tpu_custom_call.1} parent=1 // loop_header_branch
      %23 = sbr.rel (%p21) target = $region8
    $region5: #{tpu_custom_call.1} parent=1 // loop_body
      %s25 = ssub.s32 %s20, 1
      %s26 = ssub.s32 %s20, 2
      %s33 = sadd.s32 1, %s28
      %p34 = scmp.ge.s32.totalorder %s33, 2
      %s35 = scalar_select %p34, 0, %s33
      %s36 = sadd.s32 1, %s27
      %s37 = scalar_select %p34, %s36, %s27
      %p38 = scmp.ge.s32.totalorder %s37, 2
      %s39 = scalar_select %p38, 0, %s37
      %s40 = ssub.s32 %s27, %s39
      %p41 = scmp.eq.s32.totalorder %s40, 0
      %s43 = sadd.s32 %s42, 1
      %s44 = scalar_select %p41, %s42, %s43
      %p47 = pneg %p41
      %p48 = scmp.eq.s32.totalorder %s20, 3
      %p49 = por %p47, %p48
      %p50 = scmp.ne.s32.totalorder %s42, %s45
      %p51 = scmp.eq.s32.totalorder %s20, 0
      %p52 = por %p50, %p51
      %p53 = scmp.ne.s32.totalorder %s42, %s45
      %p54 = scmp.eq.s32.totalorder %s25, 3
      %p55 = por %p53, %p54
      %p56 = scmp.ne.s32.totalorder %s45, %s46
      %p57 = scmp.eq.s32.totalorder %s25, 0
      %p58 = por %p56, %p57
      %p59 = scmp.ne.s32.totalorder %s45, %s46
      %p60 = scmp.eq.s32.totalorder %s26, 3
      %p61 = por %p59, %p60
      %p63 = scmp.ne.s32.totalorder %s46, %s62
      %p64 = scmp.eq.s32.totalorder %s26, 0
      %p65 = por %p63, %p64
      %s67 = sadd.s32 %s66, 1
      %p70 = scmp.eq.s32.totalorder %s20, 3
      %p71 = scmp.ne.s32.totalorder %s66, %s68
      %p72 = scmp.eq.s32.totalorder %s20, 0
      %p73 = por %p71, %p72
      %p74 = scmp.ne.s32.totalorder %s66, %s68
      %p75 = scmp.eq.s32.totalorder %s25, 3
      %p76 = por %p74, %p75
      %p77 = scmp.ne.s32.totalorder %s68, %s69
      %p78 = scmp.eq.s32.totalorder %s25, 0
      %p79 = por %p77, %p78
      %p80 = scmp.ne.s32.totalorder %s68, %s69
      %p81 = scmp.eq.s32.totalorder %s26, 3
      %p82 = por %p80, %p81
      %p84 = scmp.ne.s32.totalorder %s69, %s83
      %p85 = scmp.eq.s32.totalorder %s26, 0
      %p86 = por %p84, %p85
      %s88 = sadd.s32 %s87, 1
      %p91 = scmp.eq.s32.totalorder %s20, 3
      %p92 = scmp.ne.s32.totalorder %s87, %s89
      %p93 = scmp.eq.s32.totalorder %s20, 0
      %p94 = por %p92, %p93
      %p95 = scmp.ne.s32.totalorder %s87, %s89
      %p96 = scmp.eq.s32.totalorder %s25, 3
      %p97 = por %p95, %p96
      %p98 = scmp.ne.s32.totalorder %s89, %s90
      %p99 = scmp.eq.s32.totalorder %s25, 0
      %p100 = por %p98, %p99
      %p101 = scmp.ne.s32.totalorder %s89, %s90
      %p102 = scmp.eq.s32.totalorder %s26, 3
      %p103 = por %p101, %p102
      %p105 = scmp.ne.s32.totalorder %s90, %s104
      %p106 = scmp.eq.s32.totalorder %s26, 0
      %p107 = por %p105, %p106
      %s109 = sadd.s32 %s108, 1
      %p112 = scmp.eq.s32.totalorder %s20, 3
      %p113 = scmp.ne.s32.totalorder %s108, %s110
      %p114 = scmp.eq.s32.totalorder %s20, 0
      %p115 = por %p113, %p114
      %p116 = scmp.ne.s32.totalorder %s108, %s110
      %p117 = scmp.eq.s32.totalorder %s25, 3
      %p118 = por %p116, %p117
      %p119 = scmp.ne.s32.totalorder %s110, %s111
      %p120 = scmp.eq.s32.totalorder %s25, 0
      %p121 = por %p119, %p120
      %p122 = scmp.ne.s32.totalorder %s110, %s111
      %p123 = scmp.eq.s32.totalorder %s26, 3
      %p124 = por %p122, %p123
      %p126 = scmp.ne.s32.totalorder %s111, %s125
      %p127 = scmp.eq.s32.totalorder %s26, 0
      %p128 = por %p126, %p127
      %s130 = sadd.s32 %s129, 1
      %p133 = scmp.eq.s32.totalorder %s20, 3
      %p134 = scmp.ne.s32.totalorder %s129, %s131
      %p135 = scmp.eq.s32.totalorder %s20, 0
      %p136 = por %p134, %p135
      %p137 = scmp.ne.s32.totalorder %s129, %s131
      %p138 = scmp.eq.s32.totalorder %s25, 3
      %p139 = por %p137, %p138
      %p140 = scmp.ne.s32.totalorder %s131, %s132
      %p141 = scmp.eq.s32.totalorder %s25, 0
      %p142 = por %p140, %p141
      %p143 = scmp.ne.s32.totalorder %s131, %s132
      %p144 = scmp.eq.s32.totalorder %s26, 3
      %p145 = por %p143, %p144
      %p147 = scmp.ne.s32.totalorder %s132, %s146
      %p148 = scmp.eq.s32.totalorder %s26, 0
      %p149 = por %p147, %p148
      %s151 = sadd.s32 %s150, 1
      %p154 = scmp.eq.s32.totalorder %s20, 3
      %p155 = scmp.ne.s32.totalorder %s150, %s152
      %p156 = scmp.eq.s32.totalorder %s20, 0
      %p157 = por %p155, %p156
      %p158 = scmp.ne.s32.totalorder %s150, %s152
      %p159 = scmp.eq.s32.totalorder %s25, 3
      %p160 = por %p158, %p159
      %p161 = scmp.ne.s32.totalorder %s152, %s153
      %p162 = scmp.eq.s32.totalorder %s25, 0
      %p163 = por %p161, %p162
      %p164 = scmp.ne.s32.totalorder %s152, %s153
      %p165 = scmp.eq.s32.totalorder %s26, 3
      %p166 = por %p164, %p165
      %p168 = scmp.ne.s32.totalorder %s153, %s167
      %p169 = scmp.eq.s32.totalorder %s26, 0
      %p170 = por %p168, %p169
      %s172 = sadd.s32 %s171, 1
      %p175 = scmp.eq.s32.totalorder %s20, 3
      %p176 = scmp.ne.s32.totalorder %s171, %s173
      %p177 = scmp.eq.s32.totalorder %s20, 0
      %p178 = por %p176, %p177
      %p179 = scmp.ne.s32.totalorder %s171, %s173
      %p180 = scmp.eq.s32.totalorder %s25, 3
      %p181 = por %p179, %p180
      %p182 = scmp.ne.s32.totalorder %s173, %s174
      %p183 = scmp.eq.s32.totalorder %s25, 0
      %p184 = por %p182, %p183
      %p185 = scmp.ne.s32.totalorder %s173, %s174
      %p186 = scmp.eq.s32.totalorder %s26, 3
      %p187 = por %p185, %p186
      %p189 = scmp.ne.s32.totalorder %s174, %s188
      %p190 = scmp.eq.s32.totalorder %s26, 0
      %p191 = por %p189, %p190
      %s193 = sadd.s32 %s192, 1
      %p196 = scmp.eq.s32.totalorder %s20, 3
      %p197 = scmp.ne.s32.totalorder %s192, %s194
      %p198 = scmp.eq.s32.totalorder %s20, 0
      %p199 = por %p197, %p198
      %p200 = scmp.ne.s32.totalorder %s192, %s194
      %p201 = scmp.eq.s32.totalorder %s25, 3
      %p202 = por %p200, %p201
      %p203 = scmp.ne.s32.totalorder %s194, %s195
      %p204 = scmp.eq.s32.totalorder %s25, 0
      %p205 = por %p203, %p204
      %p206 = scmp.ne.s32.totalorder %s194, %s195
      %p207 = scmp.eq.s32.totalorder %s26, 3
      %p208 = por %p206, %p207
      %p210 = scmp.ne.s32.totalorder %s195, %s209
      %p211 = scmp.eq.s32.totalorder %s26, 0
      %p212 = por %p210, %p211
      %s213 = ssub.s32 %s27, %s39
      %s214 = ssub.s32 %s28, %s35
      %s215 = sor.u32 %s213, %s214
      %p216 = scmp.eq.s32.totalorder %s215, 0
      %s218 = sadd.s32 %s217, 1
      %s219 = scalar_select %p216, %s217, %s218
      %p222 = pneg %p216
      %p223 = scmp.eq.s32.totalorder %s20, 3
      %p224 = por %p222, %p223
      %p225 = scmp.ne.s32.totalorder %s217, %s220
      %p226 = scmp.eq.s32.totalorder %s20, 0
      %p227 = por %p225, %p226
      %p228 = scmp.ne.s32.totalorder %s217, %s220
      %p229 = scmp.eq.s32.totalorder %s25, 3
      %p230 = por %p228, %p229
      %p231 = scmp.ne.s32.totalorder %s220, %s221
      %p232 = scmp.eq.s32.totalorder %s25, 0
      %p233 = por %p231, %p232
      %p234 = scmp.ne.s32.totalorder %s220, %s221
      %p235 = scmp.eq.s32.totalorder %s26, 3
      %p236 = por %p234, %p235
      %p238 = scmp.ne.s32.totalorder %s221, %s237
      %p239 = scmp.eq.s32.totalorder %s26, 0
      %p240 = por %p238, %p239
      %p241 = scmp.le.s32.totalorder 1, %s20
      %p242 = scmp.lt.s32.totalorder %s20, 5
      %p243 = pnand %p241, %p242
      %p244 = pneg %p243
      // Predicated region
      $region9: #{tpu_custom_call.1} parent=5 // pred_check
        _
      $region10: #{tpu_custom_call.1} parent=5 // pred_check_branch
        %246 = sbr.rel (%p243) target = $region12
      $region11: #{tpu_custom_call.1} parent=5 // pred_region
        %s247 = ssub.s32 %s20, 1
        // Predicated region
        $region13: #{tpu_custom_call.1} parent=11 // pred_check
          %p248 = pneg %p79
        $region14: #{tpu_custom_call.1} parent=11 // pred_check_branch
          %250 = sbr.rel (%p248) target = $region16
        $region15: #{tpu_custom_call.1} parent=11 // pred_region
          %s252 = ssub.s32 32, 32
          %253 = vsyncadd [#allocation6], %s252
          %s255 = sshll.u32 [#allocation5], 4
          %s256 = int_to_ptr.vmem [resolvable:$true] %s255
          %258 = dma.hbm_to_vmem [thread:$0]  %s1, 32, %s256, [#allocation6]
        $region16: #{tpu_custom_call.1} parent=11 // pred_fallthru
          _
        // Predicated region
        $region17: #{tpu_custom_call.1} parent=11 // pred_check
          %p259 = pneg %p100
        $region18: #{tpu_custom_call.1} parent=11 // pred_check_branch
          %261 = sbr.rel (%p259) target = $region20
        $region19: #{tpu_custom_call.1} parent=11 // pred_region
          _
        $region20: #{tpu_custom_call.1} parent=11 // pred_fallthru
          _
        // Predicated region
        $region21: #{tpu_custom_call.1} parent=11 // pred_check
          %p262 = pneg %p121
        $region22: #{tpu_custom_call.1} parent=11 // pred_check_branch
          %264 = sbr.rel (%p262) target = $region24
        $region23: #{tpu_custom_call.1} parent=11 // pred_region
          %s266 = ssub.s32 32, 32
          %267 = vsyncadd [#allocation9], %s266
          %s269 = sshll.u32 [#allocation8], 4
          %s270 = int_to_ptr.vmem [resolvable:$true] %s269
          %272 = dma.hbm_to_vmem [thread:$0]  %s3, 32, %s270, [#allocation9]
        $region24: #{tpu_custom_call.1} parent=11 // pred_fallthru
          _
        // Predicated region
        $region25: #{tpu_custom_call.1} parent=11 // pred_check
          %p273 = pneg %p142
        $region26: #{tpu_custom_call.1} parent=11 // pred_check_branch
          %275 = sbr.rel (%p273) target = $region28
        $region27: #{tpu_custom_call.1} parent=11 // pred_region
          _
        $region28: #{tpu_custom_call.1} parent=11 // pred_fallthru
          _
        // Predicated region
        $region29: #{tpu_custom_call.1} parent=11 // pred_check
          %p276 = pneg %p163
        $region30: #{tpu_custom_call.1} parent=11 // pred_check_branch
          %278 = sbr.rel (%p276) target = $region32
        $region31: #{tpu_custom_call.1} parent=11 // pred_region
          _
        $region32: #{tpu_custom_call.1} parent=11 // pred_fallthru
          _
        // Predicated region
        $region33: #{tpu_custom_call.1} parent=11 // pred_check
          %p279 = pneg %p184
        $region34: #{tpu_custom_call.1} parent=11 // pred_check_branch
          %281 = sbr.rel (%p279) target = $region36
        $region35: #{tpu_custom_call.1} parent=11 // pred_region
          _
        $region36: #{tpu_custom_call.1} parent=11 // pred_fallthru
          _
        // Predicated region
        $region37: #{tpu_custom_call.1} parent=11 // pred_check
          %p282 = pneg %p205
        $region38: #{tpu_custom_call.1} parent=11 // pred_check_branch
          %284 = sbr.rel (%p282) target = $region40
        $region39: #{tpu_custom_call.1} parent=11 // pred_region
          _
        $region40: #{tpu_custom_call.1} parent=11 // pred_fallthru
          _
      $region12: #{tpu_custom_call.1} parent=5 // pred_fallthru
        _
      %p285 = scmp.lt.s32.totalorder %s20, 4
      // Predicated region
      $region41: #{tpu_custom_call.1} parent=5 // pred_check
        %p286 = pneg %p285
      $region42: #{tpu_custom_call.1} parent=5 // pred_check_branch
        %288 = sbr.rel (%p286) target = $region44
      $region43: #{tpu_custom_call.1} parent=5 // pred_region
        // Predicated region
        $region45: #{tpu_custom_call.1} parent=43 // pred_check
          %p289 = pneg %p52
        $region46: #{tpu_custom_call.1} parent=43 // pred_check_branch
          %291 = sbr.rel (%p289) target = $region48
        $region47: #{tpu_custom_call.1} parent=43 // pred_region
          %p292 = scmp.lt.s32.totalorder %s27, 1
          %s293 = scalar_select %p292, %s27, 1
          %s294 = smul.addr %s293, 4
          %s295 = smul.addr %s294, 8
          %s296 = scalar_lea.vmem %s0, %s295
        $region48: #{tpu_custom_call.1} parent=43 // pred_fallthru
          _
      $region44: #{tpu_custom_call.1} parent=5 // pred_fallthru
        _
      %p297 = scmp.le.s32.totalorder 1, %s20
      %p298 = scmp.lt.s32.totalorder %s20, 5
      %p299 = pnand %p297, %p298
      %p300 = pneg %p299
      // Predicated region
      $region49: #{tpu_custom_call.1} parent=5 // pred_check
        _
      $region50: #{tpu_custom_call.1} parent=5 // pred_check_branch
        %302 = sbr.rel (%p299) target = $region52
      $region51: #{tpu_custom_call.1} parent=5 // pred_region
        %s303 = ssub.s32 %s20, 1
        // Predicated region
        $region53: #{tpu_custom_call.1} parent=51 // pred_check
          %p304 = pneg %p79
        $region54: #{tpu_custom_call.1} parent=51 // pred_check_branch
          %306 = sbr.rel (%p304) target = $region56
        $region55: #{tpu_custom_call.1} parent=51 // pred_region
          %307 = dma.done [#allocation6], 32
        $region56: #{tpu_custom_call.1} parent=51 // pred_fallthru
          _
        // Predicated region
        $region57: #{tpu_custom_call.1} parent=51 // pred_check
          %p308 = pneg %p121
        $region58: #{tpu_custom_call.1} parent=51 // pred_check_branch
          %310 = sbr.rel (%p308) target = $region60
        $region59: #{tpu_custom_call.1} parent=51 // pred_region
          %311 = dma.done [#allocation9], 32
        $region60: #{tpu_custom_call.1} parent=51 // pred_fallthru
          _
        %p312 = scmp.lt.s32.totalorder %s29, 1
        %s313 = scalar_select %p312, %s29, 1
        %s314 = smul.addr %s313, 4
        %s315 = smul.addr %s314, 8
        %s316 = scalar_lea.vmem %s0, %s315
        %p317 = pneg %p58
        %p318 = pneg %p55
        %p319 = pneg %p79
        %p320 = pneg %p76
        %p321 = pneg %p100
        %p322 = pneg %p97
        %p323 = pneg %p121
        %p324 = pneg %p118
        %p325 = pneg %p142
        %p326 = pneg %p139
        %p327 = pneg %p163
        %p328 = pneg %p160
        %p329 = pneg %p184
        %p330 = pneg %p181
        %p331 = pneg %p205
        %p332 = pneg %p202
        %p333 = pneg %p233
        %p334 = pneg %p230
        %s335 = sand.u32 %s220, 1
        %s336 = scalar_lea.sflag [#allocation7], %s335
        %s337 = sand.u32 %s220, 1
        %s338 = smul.addr %s337, 16
        %s339 = scalar_lea.vmem [#allocation10], %s338
        %p340 = scmp.lt.s32.totalorder %s29, 1
        %s341 = scalar_select %p340, %s29, 1
        %s342 = smul.addr %s341, 4
        %s343 = smul.addr %s342, 8
        %s344 = scalar_lea.vmem %s0, %s343
        %p346 = scmp.eq.s32.totalorder %s30, 0
        // Predicated region
        $region61: #{tpu_custom_call.1} parent=51 // pred_check
          %p347 = pneg %p346
        $region62: #{tpu_custom_call.1} parent=51 // pred_check_branch
          %349 = sbr.rel (%p347) target = $region64
        $region63: #{tpu_custom_call.1} parent=51 // pred_region
          %v350 = vld [vmem:[%s344] sm:$0xff]
          %v351 = vld [vmem:[%s344 + $0x8] sm:$0xff]
          %v352 = vld [vmem:[%s344 + $0x10] sm:$0xff]
          %v353 = vld [vmem:[%s344 + $0x18] sm:$0xff]
          %v354 = vld [vmem:[#allocation5] sm:$0x3]
          %v355 = vld [vmem:[%s2] sm:$0x3]
          %357 = vset.pattern.permute.xlu0 0
          %358 = vperm.xlu0 %357, %v355
          %v359 = vpop.permute.xlu0 %358
          %vm361 = vcmask 130048
          %v363 = vsel %vm361, %v354, 0
          %365 = vmatprep.subr.mxu0 0.0
          %366 = vmatpush1.msra.mxu0 0.0
          %367 = vmatprep.subr.mxu0 0.0
          %368 = vmatpush1.msra.mxu0 0.0
          %369 = vmatprep.subr.mxu0 0.0
          %370 = vmatpush1.msra.mxu0 0.0
          %371 = vmatprep.subr.mxu0 0.0
          %372 = vmatpush1.msra.mxu0 0.0
          %373 = vmatprep.subr.mxu0 0.0
          %374 = vmatpush1.msra.mxu0 0.0
          %375 = vmatprep.subr.mxu0 0.0
          %376 = vmatpush1.msra.mxu0 0.0
          %377 = vmatprep.subr.mxu0 0.0
          %378 = vmatpush1.msra.mxu0 0.0
          %379 = vmatprep.subr.mxu0 0.0
          %380 = vmatpush1.msra.mxu0 0.0
          %381 = vmatprep.subr.mxu0 0.0
          %382 = vmatpush1.msra.mxu0 0.0
          %383 = vmatprep.subr.mxu0 0.0
          %384 = vmatpush1.msra.mxu0 0.0
          %385 = vmatprep.subr.mxu0 0.0
          %386 = vmatpush1.msra.mxu0 0.0
          %387 = vmatprep.subr.mxu0 0.0
          %388 = vmatpush1.msra.mxu0 0.0
          %389 = vmatprep.subr.mxu0 0.0
          %390 = vmatpush1.msra.mxu0 0.0
          %391 = vmatprep.subr.mxu0 0.0
          %392 = vmatpush1.msra.mxu0 0.0
          %393 = vmatprep.subr.mxu0 %v353
          %394 = vmatpush1.msra.mxu0 %v352
          %395 = vmatprep.subr.mxu0 %v351
          %396 = vmatpush1.msra.mxu0 %v350
          %397 = vmatprep.subr.mxu0 0.0
          %398 = vmatpush2.msra.mxu0 0.0
          %399 = vmatprep.subr.mxu0 0.0
          %400 = vmatpush2.msra.mxu0 0.0
          %401 = vmatprep.subr.mxu0 0.0
          %402 = vmatpush2.msra.mxu0 0.0
          %403 = vmatprep.subr.mxu0 0.0
          %404 = vmatpush2.msra.mxu0 0.0
          %405 = vmatprep.subr.mxu0 0.0
          %406 = vmatpush2.msra.mxu0 0.0
          %407 = vmatprep.subr.mxu0 0.0
          %408 = vmatpush2.msra.mxu0 0.0
          %409 = vmatprep.subr.mxu0 0.0
          %410 = vmatpush2.msra.mxu0 0.0
          %411 = vmatprep.subr.mxu0 0.0
          %412 = vmatpush2.msra.mxu0 0.0
          %413 = vmatprep.subr.mxu0 0.0
          %414 = vmatpush2.msra.mxu0 0.0
          %415 = vmatprep.subr.mxu0 0.0
          %416 = vmatpush2.msra.mxu0 0.0
          %417 = vmatprep.subr.mxu0 0.0
          %418 = vmatpush2.msra.mxu0 0.0
          %419 = vmatprep.subr.mxu0 0.0
          %420 = vmatpush2.msra.mxu0 0.0
          %421 = vmatprep.subr.mxu0 0.0
          %422 = vmatpush2.msra.mxu0 0.0
          %423 = vmatprep.subr.mxu0 0.0
          %424 = vmatpush2.msra.mxu0 0.0
          %425 = vmatprep.subr.mxu0 0.0
          %426 = vmatpush2.msra.mxu0 0.0
          %427 = vmatprep.subr.mxu0 0.0
          %428 = vmatpush2.msra.mxu0 0.0
          %429 = vmatprep.mubr.f32.mxu0 0.0
          %430 = vmatmul.mubr.f32.gmra.mxu0 %v363
          %v431 = vpop.f32.mrf.mxu0
          %v432 = vadd.f32 %v359, %v431
          %v433 = vpop.f32.mrf.mxu0
          %v434 = vadd.f32 %v359, %v433
          %435 = vdwg.mxu0
          %v436 = vld [vmem:[%s5] sm:$0xff]
          %v437 = vld [vmem:[%s5 + $0x8] sm:$0xff]
          %v438 = vld [vmem:[%s5 + $0x10] sm:$0xff]
          %v439 = vld [vmem:[%s6] sm:$0xff]
          %v440 = vld [vmem:[%s6 + $0x8] sm:$0xff]
          %v441 = vld [vmem:[%s6 + $0x10] sm:$0xff]
          %443 = vset.pattern.permute.xlu0 0
          %444 = vperm.xlu0 %443, %v439
          %v445 = vpop.permute.xlu0 %444
          %448 = vset.pattern.permute.xlu0 0
          %449 = vperm.xlu0 %448, %v440
          %v450 = vpop.permute.xlu0 %449
          %453 = vset.pattern.permute.xlu0 0
          %454 = vperm.xlu0 %453, %v441
          %v455 = vpop.permute.xlu0 %454
          %v458 = vsel %vm361, %v436, 0
          %v461 = vsel %vm361, %v437, 0
          %v464 = vsel %vm361, %v438, 0
          %466 = vmatprep.subr.mxu0 0.0
          %467 = vmatpush1.msra.mxu0 0.0
          %468 = vmatprep.subr.mxu0 0.0
          %469 = vmatpush1.msra.mxu0 0.0
          %470 = vmatprep.subr.mxu0 0.0
          %471 = vmatpush1.msra.mxu0 0.0
          %472 = vmatprep.subr.mxu0 0.0
          %473 = vmatpush1.msra.mxu0 0.0
          %474 = vmatprep.subr.mxu0 0.0
          %475 = vmatpush1.msra.mxu0 0.0
          %476 = vmatprep.subr.mxu0 0.0
          %477 = vmatpush1.msra.mxu0 0.0
          %478 = vmatprep.subr.mxu0 0.0
          %479 = vmatpush1.msra.mxu0 0.0
          %480 = vmatprep.subr.mxu0 0.0
          %481 = vmatpush1.msra.mxu0 0.0
          %482 = vmatprep.subr.mxu0 0.0
          %483 = vmatpush1.msra.mxu0 0.0
          %484 = vmatprep.subr.mxu0 0.0
          %485 = vmatpush1.msra.mxu0 0.0
          %486 = vmatprep.subr.mxu0 0.0
          %487 = vmatpush1.msra.mxu0 0.0
          %488 = vmatprep.subr.mxu0 0.0
          %489 = vmatpush1.msra.mxu0 0.0
          %490 = vmatprep.subr.mxu0 0.0
          %491 = vmatpush1.msra.mxu0 0.0
          %492 = vmatprep.subr.mxu0 0.0
          %493 = vmatpush1.msra.mxu0 0.0
          %494 = vmatprep.subr.mxu0 %v353
          %495 = vmatpush1.msra.mxu0 %v352
          %496 = vmatprep.subr.mxu0 %v351
          %497 = vmatpush1.msra.mxu0 %v350
          %498 = vmatprep.subr.mxu0 0.0
          %499 = vmatpush2.msra.mxu0 0.0
          %500 = vmatprep.subr.mxu0 0.0
          %501 = vmatpush2.msra.mxu0 0.0
          %502 = vmatprep.subr.mxu0 0.0
          %503 = vmatpush2.msra.mxu0 0.0
          %504 = vmatprep.subr.mxu0 0.0
          %505 = vmatpush2.msra.mxu0 0.0
          %506 = vmatprep.subr.mxu0 0.0
          %507 = vmatpush2.msra.mxu0 0.0
          %508 = vmatprep.subr.mxu0 0.0
          %509 = vmatpush2.msra.mxu0 0.0
          %510 = vmatprep.subr.mxu0 0.0
          %511 = vmatpush2.msra.mxu0 0.0
          %512 = vmatprep.subr.mxu0 0.0
          %513 = vmatpush2.msra.mxu0 0.0
          %514 = vmatprep.subr.mxu0 0.0
          %515 = vmatpush2.msra.mxu0 0.0
          %516 = vmatprep.subr.mxu0 0.0
          %517 = vmatpush2.msra.mxu0 0.0
          %518 = vmatprep.subr.mxu0 0.0
          %519 = vmatpush2.msra.mxu0 0.0
          %520 = vmatprep.subr.mxu0 0.0
          %521 = vmatpush2.msra.mxu0 0.0
          %522 = vmatprep.subr.mxu0 0.0
          %523 = vmatpush2.msra.mxu0 0.0
          %524 = vmatprep.subr.mxu0 0.0
          %525 = vmatpush2.msra.mxu0 0.0
          %526 = vmatprep.subr.mxu0 0.0
          %527 = vmatpush2.msra.mxu0 0.0
          %528 = vmatprep.subr.mxu0 0.0
          %529 = vmatpush2.msra.mxu0 0.0
          %530 = vmatprep.mubr.f32.mxu0 0.0
          %531 = vmatmul.mubr.f32.gmra.mxu0 %v458
          %v532 = vpop.f32.mrf.mxu0
          %v533 = vadd.f32 %v445, %v532
          %v534 = vpop.f32.mrf.mxu0
          %v535 = vadd.f32 %v445, %v534
          %536 = vmatprep.mubr.f32.mxu0 0.0
          %537 = vmatmul.mubr.f32.gmra.mxu0 %v461
          %v538 = vpop.f32.mrf.mxu0
          %v539 = vadd.f32 %v450, %v538
          %v540 = vpop.f32.mrf.mxu0
          %v541 = vadd.f32 %v450, %v540
          %542 = vmatprep.mubr.f32.mxu0 0.0
          %543 = vmatmul.mubr.f32.gmra.mxu0 %v464
          %v544 = vpop.f32.mrf.mxu0
          %v545 = vadd.f32 %v455, %v544
          %v546 = vpop.f32.mrf.mxu0
          %v547 = vadd.f32 %v455, %v546
          %548 = vdwg.mxu0
          %v549 = vpack.c.bf16 %v432, %v432
          %v550 = vpack.c.bf16 %v434, %v434
          %v553 = vcombine.low %v549, %v550
          %v555 = vunpack.c.l.s4 1966171168
          %v556 = vunpack.c.0.s8 %v555
          %v557 = vlaneseq
          %v558 = vshrl.u32 %v557, 7
          %v559 = vsub.s32 %v556, %v558
          %v560 = vrot.slane %v553, %v559
          %v562 = vunpack.c.l.s4 1966171168
          %v563 = vunpack.c.0.s8 %v562
          %v564 = vlaneseq
          %v565 = vshrl.u32 %v564, 7
          %v566 = vsub.s32 %v563, %v565
          %v567 = vrot.slane %v560, %v566
          %569 = vst [vmem:[#allocation2] sm:$0x3] %v567
          %v570 = vpack.c.bf16 %v539, %v533
          %v571 = vpack.c.bf16 %v541, %v535
          %v572 = vpack.c.bf16 %v545, %v545
          %v573 = vpack.c.bf16 %v547, %v547
          %v578 = vunpack.c.l.b16 %v570
          %v579 = vunpack.c.l.b16 %v571
          %v580 = vunpack.c.h.b16 %v570
          %v581 = vunpack.c.h.b16 %v571
          %v582 = vunpack.c.l.b16 %v572
          %v583 = vunpack.c.l.b16 %v573
          %v584 = vpack.c.b16 %v579, %v578
          %v585 = vpack.c.b16 %v581, %v580
          %v586 = vpack.c.b16 %v583, %v582
          %590 = vst [vmem:[#allocation3] sm:$0xff] %v584
          %591 = vst [vmem:[#allocation3 + $0x8] sm:$0xff] %v585
          %592 = vst [vmem:[#allocation3 + $0x10] sm:$0xff] %v586
        $region64: #{tpu_custom_call.1} parent=51 // pred_fallthru
          _
        %s593 = smul.u32 %s30, 128
        %s594 = sshra.s32 %s593, 7
        %s595 = sand.u32 %s593, 127
        %s596 = smul.addr %s594, 8
        %s597 = scalar_lea.vmem %s344, %s596
        %v598 = vld [vmem:[%s597] sm:$0xff]
        %v599 = vld [vmem:[%s597 + $0x10] sm:$0xff]
        %v600 = vld [vmem:[#allocation8] sm:$0x3]
        %v601 = vld [vmem:[%s4] sm:$0x3]
        %603 = vset.pattern.permute.xlu0 0
        %604 = vperm.xlu0 %603, %v601
        %v605 = vpop.permute.xlu0 %604
        %vm607 = vcmask 130048
        %v609 = vsel %vm607, %v600, 0
        %611 = vmatprep.subr.mxu0 0.0
        %612 = vmatpush1.msra.mxu0 0.0
        %613 = vmatprep.subr.mxu0 0.0
        %614 = vmatpush1.msra.mxu0 0.0
        %615 = vmatprep.subr.mxu0 0.0
        %616 = vmatpush1.msra.mxu0 0.0
        %617 = vmatprep.subr.mxu0 0.0
        %618 = vmatpush1.msra.mxu0 0.0
        %619 = vmatprep.subr.mxu0 0.0
        %620 = vmatpush1.msra.mxu0 0.0
        %621 = vmatprep.subr.mxu0 0.0
        %622 = vmatpush1.msra.mxu0 0.0
        %623 = vmatprep.subr.mxu0 0.0
        %624 = vmatpush1.msra.mxu0 0.0
        %625 = vmatprep.subr.mxu0 0.0
        %626 = vmatpush1.msra.mxu0 0.0
        %627 = vmatprep.subr.mxu0 0.0
        %628 = vmatpush1.msra.mxu0 0.0
        %629 = vmatprep.subr.mxu0 0.0
        %630 = vmatpush1.msra.mxu0 0.0
        %631 = vmatprep.subr.mxu0 0.0
        %632 = vmatpush1.msra.mxu0 0.0
        %633 = vmatprep.subr.mxu0 0.0
        %634 = vmatpush1.msra.mxu0 0.0
        %635 = vmatprep.subr.mxu0 0.0
        %636 = vmatpush1.msra.mxu0 0.0
        %637 = vmatprep.subr.mxu0 0.0
        %638 = vmatpush1.msra.mxu0 0.0
        %639 = vmatprep.subr.mxu0 0.0
        %640 = vmatpush1.msra.mxu0 %v599
        %641 = vmatprep.subr.mxu0 0.0
        %642 = vmatpush1.msra.mxu0 %v598
        %643 = vmatprep.subr.mxu0 0.0
        %644 = vmatpush2.msra.mxu0 0.0
        %645 = vmatprep.subr.mxu0 0.0
        %646 = vmatpush2.msra.mxu0 0.0
        %647 = vmatprep.subr.mxu0 0.0
        %648 = vmatpush2.msra.mxu0 0.0
        %649 = vmatprep.subr.mxu0 0.0
        %650 = vmatpush2.msra.mxu0 0.0
        %651 = vmatprep.subr.mxu0 0.0
        %652 = vmatpush2.msra.mxu0 0.0
        %653 = vmatprep.subr.mxu0 0.0
        %654 = vmatpush2.msra.mxu0 0.0
        %655 = vmatprep.subr.mxu0 0.0
        %656 = vmatpush2.msra.mxu0 0.0
        %657 = vmatprep.subr.mxu0 0.0
        %658 = vmatpush2.msra.mxu0 0.0
        %659 = vmatprep.subr.mxu0 0.0
        %660 = vmatpush2.msra.mxu0 0.0
        %661 = vmatprep.subr.mxu0 0.0
        %662 = vmatpush2.msra.mxu0 0.0
        %663 = vmatprep.subr.mxu0 0.0
        %664 = vmatpush2.msra.mxu0 0.0
        %665 = vmatprep.subr.mxu0 0.0
        %666 = vmatpush2.msra.mxu0 0.0
        %667 = vmatprep.subr.mxu0 0.0
        %668 = vmatpush2.msra.mxu0 0.0
        %669 = vmatprep.subr.mxu0 0.0
        %670 = vmatpush2.msra.mxu0 0.0
        %671 = vmatprep.subr.mxu0 0.0
        %672 = vmatpush2.msra.mxu0 0.0
        %673 = vmatprep.subr.mxu0 0.0
        %674 = vmatpush2.msra.mxu0 0.0
        %675 = vmatprep.mubr.f32.mxu0 0.0
        %676 = vmatmul.mubr.f32.gmra.mxu0 %v609
        %v677 = vpop.f32.mrf.mxu0
        %v678 = vadd.f32 %v605, %v677
        %v679 = vpop.f32.mrf.mxu0
        %680 = vdwg.mxu0
        %v681 = vld [vmem:[#allocation2] sm:$0x3]
        %v682 = vpack.c.bf16 %v678, %v678
        %v685 = vunpack.c.l.s4 1966171168
        %v686 = vunpack.c.0.s8 %v685
        %v687 = vlaneseq
        %v688 = vshrl.u32 %v687, 7
        %v689 = vsub.s32 %v686, %v688
        %v690 = vrot.slane %v681, %v689
        %v691 = vcombine.high %v690, %v690
        %v693 = vunpack.c.l.s4 1966171168
        %v694 = vunpack.c.0.s8 %v693
        %v695 = vlaneseq
        %v696 = vshrl.u32 %v695, 7
        %v697 = vsub.s32 %v694, %v696
        %v698 = vrot.slane %v690, %v697
        %v700 = vunpack.c.l.s4 1966171168
        %v701 = vunpack.c.0.s8 %v700
        %v702 = vlaneseq
        %v703 = vshrl.u32 %v702, 7
        %v704 = vsub.s32 %v701, %v703
        %v705 = vrot.slane %v691, %v704
        %708 = vxpose.xlu0.c.b16.start [1/8] %v698, 128
        %709 = vxpose.xlu0.c.b16.cont [2/8] 0, 128
        %710 = vxpose.xlu0.c.b16.cont [3/8] 0, 128
        %711 = vxpose.xlu0.c.b16.cont [4/8] 0, 128
        %712 = vxpose.xlu0.c.b16.cont [5/8] 0, 128
        %713 = vxpose.xlu0.c.b16.cont [6/8] 0, 128
        %714 = vxpose.xlu0.c.b16.cont [7/8] 0, 128
        %715 = vxpose.xlu0.c.b16.end [8/8] 0, 128
        %v716 = vpop.trf.xlu0
        %v717 = vpop.trf.xlu0
        %v718 = vpop.trf.xlu0
        %v719 = vpop.trf.xlu0
        %v720 = vpop.trf.xlu0
        %v721 = vpop.trf.xlu0
        %v722 = vpop.trf.xlu0
        %v723 = vpop.trf.xlu0
        %724 = vxpose.xlu0.c.b16.start [1/8] %v705, 128
        %725 = vxpose.xlu0.c.b16.cont [2/8] 0, 128
        %726 = vxpose.xlu0.c.b16.cont [3/8] 0, 128
        %727 = vxpose.xlu0.c.b16.cont [4/8] 0, 128
        %728 = vxpose.xlu0.c.b16.cont [5/8] 0, 128
        %729 = vxpose.xlu0.c.b16.cont [6/8] 0, 128
        %730 = vxpose.xlu0.c.b16.cont [7/8] 0, 128
        %731 = vxpose.xlu0.c.b16.end [8/8] 0, 128
        %v732 = vpop.trf.xlu0
        %v733 = vpop.trf.xlu0
        %v734 = vpop.trf.xlu0
        %v735 = vpop.trf.xlu0
        %v736 = vpop.trf.xlu0
        %v737 = vpop.trf.xlu0
        %v738 = vpop.trf.xlu0
        %v739 = vpop.trf.xlu0
        %vm740 = vcmask 15360
        %v742 = vsel %vm740, %v716, 0
        %v745 = vsel %vm740, %v717, 0
        %v748 = vsel %vm740, %v718, 0
        %v751 = vsel %vm740, %v719, 0
        %v754 = vsel %vm740, %v720, 0
        %v757 = vsel %vm740, %v721, 0
        %v760 = vsel %vm740, %v722, 0
        %v763 = vsel %vm740, %v723, 0
        %v766 = vsel %vm740, %v732, 0
        %v769 = vsel %vm740, %v733, 0
        %v772 = vsel %vm740, %v734, 0
        %v775 = vsel %vm740, %v735, 0
        %v778 = vsel %vm740, %v736, 0
        %v781 = vsel %vm740, %v737, 0
        %v784 = vsel %vm740, %v738, 0
        %v787 = vsel %vm740, %v739, 0
        %vm789 = vcmask 1040384
        %v791 = vsel %vm789, %v682, 0
        %793 = vmatprep.subr.bf16.mxu0 0
        %794 = vmatpush1.bf16.msra.mxu0 0
        %795 = vmatprep.subr.bf16.mxu0 0
        %796 = vmatpush1.bf16.msra.mxu0 0
        %797 = vmatprep.subr.bf16.mxu0 0
        %798 = vmatpush1.bf16.msra.mxu0 0
        %799 = vmatprep.subr.bf16.mxu0 0
        %800 = vmatpush1.bf16.msra.mxu0 0
        %801 = vmatprep.subr.bf16.mxu0 0
        %802 = vmatpush1.bf16.msra.mxu0 0
        %803 = vmatprep.subr.bf16.mxu0 0
        %804 = vmatpush1.bf16.msra.mxu0 0
        %805 = vmatprep.subr.bf16.mxu0 0
        %806 = vmatpush1.bf16.msra.mxu0 0
        %807 = vmatprep.subr.bf16.mxu0 0
        %808 = vmatpush1.bf16.msra.mxu0 %v791
        %809 = vmatprep.subr.bf16.mxu0 0
        %810 = vmatpush2.bf16.msra.mxu0 0
        %811 = vmatprep.subr.bf16.mxu0 0
        %812 = vmatpush2.bf16.msra.mxu0 0
        %813 = vmatprep.subr.bf16.mxu0 0
        %814 = vmatpush2.bf16.msra.mxu0 0
        %815 = vmatprep.subr.bf16.mxu0 0
        %816 = vmatpush2.bf16.msra.mxu0 0
        %817 = vmatprep.subr.bf16.mxu0 0
        %818 = vmatpush2.bf16.msra.mxu0 0
        %819 = vmatprep.subr.bf16.mxu0 0
        %820 = vmatpush2.bf16.msra.mxu0 0
        %821 = vmatprep.subr.bf16.mxu0 0
        %822 = vmatpush2.bf16.msra.mxu0 0
        %823 = vmatprep.subr.bf16.mxu0 0
        %824 = vmatpush2.bf16.msra.mxu0 0
        %825 = vmatprep.mubr.bf16.mxu0 0
        %826 = vmatmul.mubr.bf16.gmra.mxu0 %v742
        %v827 = vpop.f32.mrf.mxu0
        %v828 = vadd.f32 0.0, %v827
        %v829 = vpop.f32.mrf.mxu0
        %v830 = vpop.f32.mrf.mxu0
        %v831 = vadd.f32 0.0, %v830
        %v832 = vpop.f32.mrf.mxu0
        %833 = vmatprep.mubr.bf16.mxu0 0
        %834 = vmatmul.mubr.bf16.gmra.mxu0 %v745
        %v835 = vpop.f32.mrf.mxu0
        %v836 = vadd.f32 0.0, %v835
        %v837 = vpop.f32.mrf.mxu0
        %v838 = vpop.f32.mrf.mxu0
        %v839 = vadd.f32 0.0, %v838
        %v840 = vpop.f32.mrf.mxu0
        %841 = vmatprep.mubr.bf16.mxu0 0
        %842 = vmatmul.mubr.bf16.gmra.mxu0 %v748
        %v843 = vpop.f32.mrf.mxu0
        %v844 = vadd.f32 0.0, %v843
        %v845 = vpop.f32.mrf.mxu0
        %v846 = vpop.f32.mrf.mxu0
        %v847 = vadd.f32 0.0, %v846
        %v848 = vpop.f32.mrf.mxu0
        %849 = vmatprep.mubr.bf16.mxu0 0
        %850 = vmatmul.mubr.bf16.gmra.mxu0 %v751
        %v851 = vpop.f32.mrf.mxu0
        %v852 = vadd.f32 0.0, %v851
        %v853 = vpop.f32.mrf.mxu0
        %v854 = vpop.f32.mrf.mxu0
        %v855 = vadd.f32 0.0, %v854
        %v856 = vpop.f32.mrf.mxu0
        %857 = vmatprep.mubr.bf16.mxu0 0
        %858 = vmatmul.mubr.bf16.gmra.mxu0 %v754
        %v859 = vpop.f32.mrf.mxu0
        %v860 = vadd.f32 0.0, %v859
        %v861 = vpop.f32.mrf.mxu0
        %v862 = vpop.f32.mrf.mxu0
        %v863 = vadd.f32 0.0, %v862
        %v864 = vpop.f32.mrf.mxu0
        %865 = vmatprep.mubr.bf16.mxu0 0
        %866 = vmatmul.mubr.bf16.gmra.mxu0 %v757
        %v867 = vpop.f32.mrf.mxu0
        %v868 = vadd.f32 0.0, %v867
        %v869 = vpop.f32.mrf.mxu0
        %v870 = vpop.f32.mrf.mxu0
        %v871 = vadd.f32 0.0, %v870
        %v872 = vpop.f32.mrf.mxu0
        %873 = vmatprep.mubr.bf16.mxu0 0
        %874 = vmatmul.mubr.bf16.gmra.mxu0 %v760
        %v875 = vpop.f32.mrf.mxu0
        %v876 = vadd.f32 0.0, %v875
        %v877 = vpop.f32.mrf.mxu0
        %v878 = vpop.f32.mrf.mxu0
        %v879 = vadd.f32 0.0, %v878
        %v880 = vpop.f32.mrf.mxu0
        %881 = vmatprep.mubr.bf16.mxu0 0
        %882 = vmatmul.mubr.bf16.gmra.mxu0 %v763
        %v883 = vpop.f32.mrf.mxu0
        %v884 = vadd.f32 0.0, %v883
        %v885 = vpop.f32.mrf.mxu0
        %v886 = vpop.f32.mrf.mxu0
        %v887 = vadd.f32 0.0, %v886
        %v888 = vpop.f32.mrf.mxu0
        %889 = vmatprep.mubr.bf16.mxu0 0
        %890 = vmatmul.mubr.bf16.gmra.mxu0 %v766
        %v891 = vpop.f32.mrf.mxu0
        %v892 = vadd.f32 0.0, %v891
        %v893 = vpop.f32.mrf.mxu0
        %v894 = vpop.f32.mrf.mxu0
        %v895 = vadd.f32 0.0, %v894
        %v896 = vpop.f32.mrf.mxu0
        %897 = vmatprep.mubr.bf16.mxu0 0
        %898 = vmatmul.mubr.bf16.gmra.mxu0 %v769
        %v899 = vpop.f32.mrf.mxu0
        %v900 = vadd.f32 0.0, %v899
        %v901 = vpop.f32.mrf.mxu0
        %v902 = vpop.f32.mrf.mxu0
        %v903 = vadd.f32 0.0, %v902
        %v904 = vpop.f32.mrf.mxu0
        %905 = vmatprep.mubr.bf16.mxu0 0
        %906 = vmatmul.mubr.bf16.gmra.mxu0 %v772
        %v907 = vpop.f32.mrf.mxu0
        %v908 = vadd.f32 0.0, %v907
        %v909 = vpop.f32.mrf.mxu0
        %v910 = vpop.f32.mrf.mxu0
        %v911 = vadd.f32 0.0, %v910
        %v912 = vpop.f32.mrf.mxu0
        %913 = vmatprep.mubr.bf16.mxu0 0
        %914 = vmatmul.mubr.bf16.gmra.mxu0 %v775
        %v915 = vpop.f32.mrf.mxu0
        %v916 = vadd.f32 0.0, %v915
        %v917 = vpop.f32.mrf.mxu0
        %v918 = vpop.f32.mrf.mxu0
        %v919 = vadd.f32 0.0, %v918
        %v920 = vpop.f32.mrf.mxu0
        %921 = vmatprep.mubr.bf16.mxu0 0
        %922 = vmatmul.mubr.bf16.gmra.mxu0 %v778
        %v923 = vpop.f32.mrf.mxu0
        %v924 = vadd.f32 0.0, %v923
        %v925 = vpop.f32.mrf.mxu0
        %v926 = vpop.f32.mrf.mxu0
        %v927 = vadd.f32 0.0, %v926
        %v928 = vpop.f32.mrf.mxu0
        %929 = vmatprep.mubr.bf16.mxu0 0
        %930 = vmatmul.mubr.bf16.gmra.mxu0 %v781
        %v931 = vpop.f32.mrf.mxu0
        %v932 = vadd.f32 0.0, %v931
        %v933 = vpop.f32.mrf.mxu0
        %v934 = vpop.f32.mrf.mxu0
        %v935 = vadd.f32 0.0, %v934
        %v936 = vpop.f32.mrf.mxu0
        %937 = vmatprep.mubr.bf16.mxu0 0
        %938 = vmatmul.mubr.bf16.gmra.mxu0 %v784
        %v939 = vpop.f32.mrf.mxu0
        %v940 = vadd.f32 0.0, %v939
        %v941 = vpop.f32.mrf.mxu0
        %v942 = vpop.f32.mrf.mxu0
        %v943 = vadd.f32 0.0, %v942
        %v944 = vpop.f32.mrf.mxu0
        %945 = vmatprep.mubr.bf16.mxu0 0
        %946 = vmatmul.mubr.bf16.gmra.mxu0 %v787
        %v947 = vpop.f32.mrf.mxu0
        %v948 = vadd.f32 0.0, %v947
        %v949 = vpop.f32.mrf.mxu0
        %v950 = vpop.f32.mrf.mxu0
        %v951 = vadd.f32 0.0, %v950
        %v952 = vpop.f32.mrf.mxu0
        %953 = vdwg.mxu0
        %v954 = vmax.f32 %v828, %v844
        %v955 = vmax.f32 %v831, %v847
        %v956 = vmax.f32 %v836, %v852
        %v957 = vmax.f32 %v839, %v855
        %v958 = vmax.f32 %v954, %v860
        %v959 = vmax.f32 %v955, %v863
        %v960 = vmax.f32 %v956, %v868
        %v961 = vmax.f32 %v957, %v871
        %v962 = vmax.f32 %v958, %v876
        %v963 = vmax.f32 %v959, %v879
        %v964 = vmax.f32 %v960, %v884
        %v965 = vmax.f32 %v961, %v887
        %v966 = vmax.f32 %v962, %v892
        %v967 = vmax.f32 %v963, %v895
        %v968 = vmax.f32 %v964, %v900
        %v969 = vmax.f32 %v965, %v903
        %v970 = vmax.f32 %v966, %v908
        %v971 = vmax.f32 %v967, %v911
        %v972 = vmax.f32 %v968, %v916
        %v973 = vmax.f32 %v969, %v919
        %v974 = vmax.f32 %v970, %v924
        %v975 = vmax.f32 %v971, %v927
        %v976 = vmax.f32 %v972, %v932
        %v977 = vmax.f32 %v973, %v935
        %v978 = vmax.f32 %v974, %v940
        %v979 = vmax.f32 %v975, %v943
        %v980 = vmax.f32 %v976, %v948
        %v981 = vmax.f32 %v977, %v951
        %v982 = vmax.f32 %v978, %v979
        %v983 = vmax.f32 %v980, %v981
        %v984 = vmax.f32 %v982, %v983
        %v985 = vrot.slane %v984, 4
        %v986 = vmax.f32 %v984, %v985
        %v987 = vrot.slane %v986, 2
        %v988 = vmax.f32 %v986, %v987
        %v989 = vrot.slane %v988, 1
        %v990 = vmax.f32 %v988, %v989
        %v991 = vsub.f32 %v828, %v990
        %v992 = vsub.f32 %v831, %v990
        %v993 = vsub.f32 %v836, %v990
        %v994 = vsub.f32 %v839, %v990
        %v995 = vsub.f32 %v844, %v990
        %v996 = vsub.f32 %v847, %v990
        %v997 = vsub.f32 %v852, %v990
        %v998 = vsub.f32 %v855, %v990
        %v999 = vsub.f32 %v860, %v990
        %v1000 = vsub.f32 %v863, %v990
        %v1001 = vsub.f32 %v868, %v990
        %v1002 = vsub.f32 %v871, %v990
        %v1003 = vsub.f32 %v876, %v990
        %v1004 = vsub.f32 %v879, %v990
        %v1005 = vsub.f32 %v884, %v990
        %v1006 = vsub.f32 %v887, %v990
        %v1007 = vsub.f32 %v892, %v990
        %v1008 = vsub.f32 %v895, %v990
        %v1009 = vsub.f32 %v900, %v990
        %v1010 = vsub.f32 %v903, %v990
        %v1011 = vsub.f32 %v908, %v990
        %v1012 = vsub.f32 %v911, %v990
        %v1013 = vsub.f32 %v916, %v990
        %v1014 = vsub.f32 %v919, %v990
        %v1015 = vsub.f32 %v924, %v990
        %v1016 = vsub.f32 %v927, %v990
        %v1017 = vsub.f32 %v932, %v990
        %v1018 = vsub.f32 %v935, %v990
        %v1019 = vsub.f32 %v940, %v990
        %v1020 = vsub.f32 %v943, %v990
        %v1021 = vsub.f32 %v948, %v990
        %v1022 = vsub.f32 %v951, %v990
        %v1023 = vmul.f32 %v991, 1.442695
        %v1024 = vpow.pop %v1023
        %v1025 = vmul.f32 %v992, 1.442695
        %v1026 = vpow.pop %v1025
        %v1027 = vmul.f32 %v993, 1.442695
        %v1028 = vpow.pop %v1027
        %v1029 = vmul.f32 %v994, 1.442695
        %v1030 = vpow.pop %v1029
        %v1031 = vmul.f32 %v995, 1.442695
        %v1032 = vpow.pop %v1031
        %v1033 = vmul.f32 %v996, 1.442695
        %v1034 = vpow.pop %v1033
        %v1035 = vmul.f32 %v997, 1.442695
        %v1036 = vpow.pop %v1035
        %v1037 = vmul.f32 %v998, 1.442695
        %v1038 = vpow.pop %v1037
        %v1039 = vmul.f32 %v999, 1.442695
        %v1040 = vpow.pop %v1039
        %v1041 = vmul.f32 %v1000, 1.442695
        %v1042 = vpow.pop %v1041
        %v1043 = vmul.f32 %v1001, 1.442695
        %v1044 = vpow.pop %v1043
        %v1045 = vmul.f32 %v1002, 1.442695
        %v1046 = vpow.pop %v1045
        %v1047 = vmul.f32 %v1003, 1.442695
        %v1048 = vpow.pop %v1047
        %v1049 = vmul.f32 %v1004, 1.442695
        %v1050 = vpow.pop %v1049
        %v1051 = vmul.f32 %v1005, 1.442695
        %v1052 = vpow.pop %v1051
        %v1053 = vmul.f32 %v1006, 1.442695
        %v1054 = vpow.pop %v1053
        %v1055 = vmul.f32 %v1007, 1.442695
        %v1056 = vpow.pop %v1055
        %v1057 = vmul.f32 %v1008, 1.442695
        %v1058 = vpow.pop %v1057
        %v1059 = vmul.f32 %v1009, 1.442695
        %v1060 = vpow.pop %v1059
        %v1061 = vmul.f32 %v1010, 1.442695
        %v1062 = vpow.pop %v1061
        %v1063 = vmul.f32 %v1011, 1.442695
        %v1064 = vpow.pop %v1063
        %v1065 = vmul.f32 %v1012, 1.442695
        %v1066 = vpow.pop %v1065
        %v1067 = vmul.f32 %v1013, 1.442695
        %v1068 = vpow.pop %v1067
        %v1069 = vmul.f32 %v1014, 1.442695
        %v1070 = vpow.pop %v1069
        %v1071 = vmul.f32 %v1015, 1.442695
        %v1072 = vpow.pop %v1071
        %v1073 = vmul.f32 %v1016, 1.442695
        %v1074 = vpow.pop %v1073
        %v1075 = vmul.f32 %v1017, 1.442695
        %v1076 = vpow.pop %v1075
        %v1077 = vmul.f32 %v1018, 1.442695
        %v1078 = vpow.pop %v1077
        %v1079 = vmul.f32 %v1019, 1.442695
        %v1080 = vpow.pop %v1079
        %v1081 = vmul.f32 %v1020, 1.442695
        %v1082 = vpow.pop %v1081
        %v1083 = vmul.f32 %v1021, 1.442695
        %v1084 = vpow.pop %v1083
        %v1085 = vmul.f32 %v1022, 1.442695
        %v1086 = vpow.pop %v1085
        %v1087 = vld [vmem:[#allocation3] sm:$0xff]
        %v1088 = vld [vmem:[#allocation3 + $0x8] sm:$0xff]
        %v1089 = vld [vmem:[#allocation3 + $0x10] sm:$0xff]
        %v1090 = vpack.c.bf16 %v1026, %v1024
        %v1091 = vpack.c.bf16 %v1030, %v1028
        %v1092 = vpack.c.bf16 %v1034, %v1032
        %v1093 = vpack.c.bf16 %v1038, %v1036
        %v1094 = vpack.c.bf16 %v1042, %v1040
        %v1095 = vpack.c.bf16 %v1046, %v1044
        %v1096 = vpack.c.bf16 %v1050, %v1048
        %v1097 = vpack.c.bf16 %v1054, %v1052
        %v1098 = vpack.c.bf16 %v1058, %v1056
        %v1099 = vpack.c.bf16 %v1062, %v1060
        %v1100 = vpack.c.bf16 %v1066, %v1064
        %v1101 = vpack.c.bf16 %v1070, %v1068
        %v1102 = vpack.c.bf16 %v1074, %v1072
        %v1103 = vpack.c.bf16 %v1078, %v1076
        %v1104 = vpack.c.bf16 %v1082, %v1080
        %v1105 = vpack.c.bf16 %v1086, %v1084
        %v1109 = vunpack.c.l.b16 %v1087
        %v1110 = vunpack.c.h.b16 %v1087
        %v1111 = vunpack.c.l.b16 %v1088
        %v1112 = vunpack.c.h.b16 %v1088
        %v1113 = vunpack.c.l.b16 %v1089
        %v1114 = vunpack.c.h.b16 %v1089
        %v1115 = vpack.c.b16 %v1111, %v1109
        %v1116 = vpack.c.b16 %v1112, %v1110
        %v1117 = vpack.c.b16 %v1113, %v1113
        %v1118 = vpack.c.b16 %v1114, %v1114
        %1123 = vmatprep.subr.bf16.mxu0 0
        %1124 = vmatpush1.bf16.msra.mxu0 %v1097
        %1125 = vmatprep.subr.bf16.mxu0 0
        %1126 = vmatpush1.bf16.msra.mxu0 %v1096
        %1127 = vmatprep.subr.bf16.mxu0 0
        %1128 = vmatpush1.bf16.msra.mxu0 %v1095
        %1129 = vmatprep.subr.bf16.mxu0 0
        %1130 = vmatpush1.bf16.msra.mxu0 %v1094
        %1131 = vmatprep.subr.bf16.mxu0 0
        %1132 = vmatpush1.bf16.msra.mxu0 %v1093
        %1133 = vmatprep.subr.bf16.mxu0 0
        %1134 = vmatpush1.bf16.msra.mxu0 %v1092
        %1135 = vmatprep.subr.bf16.mxu0 0
        %1136 = vmatpush1.bf16.msra.mxu0 %v1091
        %1137 = vmatprep.subr.bf16.mxu0 0
        %1138 = vmatpush1.bf16.msra.mxu0 %v1090
        %1139 = vmatprep.subr.bf16.mxu0 0
        %1140 = vmatpush2.bf16.msra.mxu0 %v1105
        %1141 = vmatprep.subr.bf16.mxu0 0
        %1142 = vmatpush2.bf16.msra.mxu0 %v1104
        %1143 = vmatprep.subr.bf16.mxu0 0
        %1144 = vmatpush2.bf16.msra.mxu0 %v1103
        %1145 = vmatprep.subr.bf16.mxu0 0
        %1146 = vmatpush2.bf16.msra.mxu0 %v1102
        %1147 = vmatprep.subr.bf16.mxu0 0
        %1148 = vmatpush2.bf16.msra.mxu0 %v1101
        %1149 = vmatprep.subr.bf16.mxu0 0
        %1150 = vmatpush2.bf16.msra.mxu0 %v1100
        %1151 = vmatprep.subr.bf16.mxu0 0
        %1152 = vmatpush2.bf16.msra.mxu0 %v1099
        %1153 = vmatprep.subr.bf16.mxu0 0
        %1154 = vmatpush2.bf16.msra.mxu0 %v1098
        %1155 = vmatprep.mubr.bf16.mxu0 %v1116
        %1156 = vmatmul.mubr.bf16.gmra.mxu0 %v1115
        %v1157 = vpop.f32.mrf.mxu0
        %v1158 = vadd.f32 0.0, %v1157
        %v1159 = vpop.f32.mrf.mxu0
        %v1160 = vpop.f32.mrf.mxu0
        %v1161 = vadd.f32 0.0, %v1160
        %v1162 = vpop.f32.mrf.mxu0
        %1163 = vmatprep.mubr.bf16.mxu0 %v1118
        %1164 = vmatmul.mubr.bf16.gmra.mxu0 %v1117
        %v1165 = vpop.f32.mrf.mxu0
        %v1166 = vadd.f32 0.0, %v1165
        %v1167 = vpop.f32.mrf.mxu0
        %v1168 = vpop.f32.mrf.mxu0
        %v1169 = vpop.f32.mrf.mxu0
        %1170 = vdwg.mxu0
        %v1171 = vrcp.pop %v1166
        %s1172 = sld [smem:[#allocation4]]
        %v1173 = vlaneseq
        %v1174 = vshrl.u32 %v1173, 7
        %v1175 = vsub.s32 0, %v1174
        %v1176 = vrot.slane %v1171, %v1175
        %v1177 = vmul.f32 %v1158, %v1176
        %v1178 = vmul.f32 %v1161, %v1176
        %v1179 = vstv %s1172
        %v1180 = vmul.f32 %v1179, %v1177
        %v1181 = vmul.f32 %v1179, %v1178
        %v1182 = vadd.f32 %v1180, %v598
        %v1183 = vadd.f32 %v1181, %v599
        %1184 = vst [vmem:[%s339] sm:$0xff] %v1182
        %1185 = vst [vmem:[%s339 + $0x8] sm:$0xff] %v1183
        %s1186 = sand.u32 %s220, 1
        %s1187 = scalar_lea.sflag [#allocation7], %s1186
        %s1188 = sand.u32 %s220, 1
        %s1189 = smul.addr %s1188, 16
        %s1190 = scalar_lea.vmem [#allocation10], %s1189
        // Predicated region
        $region65: #{tpu_custom_call.1} parent=51 // pred_check
          %p1191 = pneg %p230
        $region66: #{tpu_custom_call.1} parent=51 // pred_check_branch
          %1193 = sbr.rel (%p1191) target = $region68
        $region67: #{tpu_custom_call.1} parent=51 // pred_region
          %s1195 = ssub.s32 256, 256
          %1196 = vsyncadd %s1187, %s1195
          %s1197 = smul.addr %s29, 4
          %s1198 = sadd.s32 %s30, %s1197
          %s1199 = smul.addr %s1198, 128
          %s1200 = scalar_lea.hbm %s8, %s1199
          %s1201 = sshll.u32 %s1190, 4
          %s1202 = int_to_ptr.vmem [resolvable:$true] %s1201
          %1207 = dma.vmem_to_hbm [thread:$0]  %s1202, 256, %s1200, %s1187, 128, 256, 8
        $region68: #{tpu_custom_call.1} parent=51 // pred_fallthru
          _
      $region52: #{tpu_custom_call.1} parent=5 // pred_fallthru
        _
      %p1208 = scmp.le.s32.totalorder 2, %s20
      // Predicated region
      $region69: #{tpu_custom_call.1} parent=5 // pred_check
        %p1209 = pneg %p1208
      $region70: #{tpu_custom_call.1} parent=5 // pred_check_branch
        %1211 = sbr.rel (%p1209) target = $region72
      $region71: #{tpu_custom_call.1} parent=5 // pred_region
        %s1212 = ssub.s32 %s20, 2
        // Predicated region
        $region73: #{tpu_custom_call.1} parent=71 // pred_check
          %p1213 = pneg %p236
        $region74: #{tpu_custom_call.1} parent=71 // pred_check_branch
          %1215 = sbr.rel (%p1213) target = $region76
        $region75: #{tpu_custom_call.1} parent=71 // pred_region
          %s1216 = sand.u32 %s221, 1
          %s1217 = scalar_lea.sflag [#allocation7], %s1216
          %s1218 = sand.u32 %s221, 1
          %s1219 = smul.addr %s1218, 16
          %s1220 = scalar_lea.vmem [#allocation10], %s1219
          %1221 = dma.done %s1217, 256
        $region76: #{tpu_custom_call.1} parent=71 // pred_fallthru
          _
      $region72: #{tpu_custom_call.1} parent=5 // pred_fallthru
        _
    $region6: #{tpu_custom_call.1} parent=1 // loop_footer
      %s24 = sadd.s32 1, %s20
    $region7: #{tpu_custom_call.1} parent=1 // loop_footer_branch
      %19 = sbr.rel target = $region3
    $region8: #{tpu_custom_call.1} parent=1 // loop_exit
      _
    %1222 = vsyncpa [#allocation6], 1
    %s1223 = scalar_lea.sflag [#allocation6], 1
    %1224 = vsyncpa %s1223, 1
    %1225 = vsyncpa [#allocation9], 1
    %1226 = vsyncpa [#allocation7], 1
    %s1227 = scalar_lea.sflag [#allocation7], 1
    %1228 = vsyncpa %s1227, 1

</llo_original>
